<compile_context>
chip_gen: v6e
topology: v6e:2x2x1
jax: 0.10.0
libtpu: 0.0.40
codegen_flags: <defaults>
</compile_context>

<pallas_src>
import functools

import jax
import jax.numpy as jnp
import numpy as np
from jax import lax
from jax.experimental import pallas as pl
from jax.experimental.pallas import tpu as pltpu


def _round_up(x, m):
    return (x + m - 1) // m * m


# ----------------------------------------------------------------------------
# Generation-aware VMEM planning.
# ----------------------------------------------------------------------------
def _tpu_vmem_capacity_bytes():
    """Per-TensorCore VMEM capacity; conservative 64 MiB if unknown (v7x)."""
    try:
        info = pltpu.get_tpu_info()
        cap = getattr(info, "vmem_capacity_bytes", None)
        if cap:
            return int(cap)
    except Exception:
        pass
    try:
        kind = jax.devices()[0].device_kind.lower()
    except Exception:
        kind = ""
    if ("v5" in kind) or ("v6" in kind) or ("trillium" in kind):
        return 128 * 1024 * 1024          # v5e / v5p / v6e: 128 MiB per core
    return 64 * 1024 * 1024               # v7x / unknown: 64 MiB per core


def _vmem_plan():
    """Returns (vmem_limit_bytes, ref_working_set_budget_bytes)."""
    cap = _tpu_vmem_capacity_bytes()
    # Leave headroom for compiler-internal scratch / semaphores.
    vmem_limit = min(int(cap * 3 // 4), cap - (8 << 20))
    ref_budget = vmem_limit * 2 // 3
    return vmem_limit, ref_budget


def _choose_mode_tile(mp, cin, cout, ref_budget):
    """Mode-axis (lane) tile so the DOUBLE-BUFFERED working set of all refs
    (2 weight slabs + activations + outputs) fits `ref_budget`.  Multiple of
    128 and divides mp (mp is itself a multiple of 128)."""
    per_tm = 2 * 4 * (2 * cin * cout + 2 * cin + 2 * cout)  # bytes per lane col
    tm = max(128, (ref_budget // per_tm) // 128 * 128)
    tm = min(tm, mp)
    while mp % tm != 0:
        tm -= 128
    return tm


# ----------------------------------------------------------------------------
# Pallas kernel: complex contraction over in_channels, per (mode-tile, batch).
#   a:  (2*Cin, TM)      rows = [a_r (Cin) ; a_i (Cin)]
#   wr: (Cin, Cout, TM)  = Re(w)
#   wi: (Cin, Cout, TM)  = Im(w)
#   o:  (2*Cout, TM)     rows = [out_r (Cout) ; out_i (Cout)]
# where out[o, m] = sum_i a[i, m] * w[i, o, m]   (complex, per lane m).
# ----------------------------------------------------------------------------
def _spectral_mul_kernel(a_ref, wr_ref, wi_ref, o_ref):
    cin, cout, _ = wr_ref.shape

    # Cout chunks of 8 sublanes keep live accumulators small (at Cin=Cout=64,
    # tm=512 un-chunked accumulators would eat the whole register file).
    co_chunk = 8 if cout % 8 == 0 else cout
    unroll = True if cin <= 8 else False

    for co in range(0, cout, co_chunk):

        def mac(i, acc, _co=co):
            acc_r, acc_i = acc
            # (1, TM) activation rows; broadcast over the Cout-chunk sublanes
            # happens in the multiply (no duplicated broadcast loads).
            a_r = a_ref[pl.ds(i, 1), :]
            a_i = a_ref[pl.ds(cin + i, 1), :]
            w_r = wr_ref[i, pl.ds(_co, co_chunk), :]
            w_i = wi_ref[i, pl.ds(_co, co_chunk), :]
            acc_r = acc_r + (a_r * w_r - a_i * w_i)
            acc_i = acc_i + (a_r * w_i + a_i * w_r)
            return acc_r, acc_i

        # i = 0 peeled: accumulators start as the first product (no zero-init).
        a_r0 = a_ref[pl.ds(0, 1), :]
        a_i0 = a_ref[pl.ds(cin, 1), :]
        w_r0 = wr_ref[0, pl.ds(co, co_chunk), :]
        w_i0 = wi_ref[0, pl.ds(co, co_chunk), :]
        acc0 = (a_r0 * w_r0 - a_i0 * w_i0,
                a_r0 * w_i0 + a_i0 * w_r0)

        acc_r, acc_i = lax.fori_loop(1, cin, mac, acc0, unroll=unroll)

        if cout % 8 == 0:
            # Aligned (8, TM) slice stores -> unmasked vst, no concat shuffle.
            o_ref[pl.ds(co, co_chunk), :] = acc_r
            o_ref[pl.ds(cout + co, co_chunk), :] = acc_i
        else:
            # Small-Cout path (demo Cout=4): single (2*Cout, TM) full-tile store.
            o_ref[...] = jnp.concatenate([acc_r, acc_i], axis=0)


def _spectral_mul_pallas(a_packed, w_rf, w_if):
    """a_packed: (B, 2*Cin, Mp) f32; w_*: (Cin, Cout, Mp) f32.
    Returns o: (B, 2*Cout, Mp) f32 with rows [out_r; out_i]."""
    B, rows_a, Mp = a_packed.shape
    Cin, Cout, _ = w_rf.shape
    assert rows_a == 2 * Cin and Mp % 128 == 0

    vmem_limit, ref_budget = _vmem_plan()
    tm = _choose_mode_tile(Mp, Cin, Cout, ref_budget)
    nt = Mp // tm

    # Contiguous per-tile weight slabs: (Cin, Cout, Mp) -> (nt, Cin, Cout, tm).
    w_rt = w_rf.reshape(Cin, Cout, nt, tm).transpose(2, 0, 1, 3)
    w_it = w_if.reshape(Cin, Cout, nt, tm).transpose(2, 0, 1, 3)

    grid = (nt, B)  # mode tiles outermost, B innermost -> weights stay resident

    a_spec = pl.BlockSpec((None, 2 * Cin, tm), lambda mt, b: (b, 0, mt))
    w_spec = pl.BlockSpec((None, Cin, Cout, tm), lambda mt, b: (mt, 0, 0, 0))
    o_spec = pl.BlockSpec((None, 2 * Cout, tm), lambda mt, b: (b, 0, mt))

    if nt >= 2:
        # Megacore splits the mode axis -> total weight HBM traffic constant.
        dims = ("parallel", "arbitrary")
    else:
        # Single mode tile (demo sizes): split B so the second core works too.
        dims = ("arbitrary", "parallel")

    return pl.pallas_call(
        _spectral_mul_kernel,
        out_shape=jax.ShapeDtypeStruct((B, 2 * Cout, Mp), jnp.float32),
        grid=grid,
        in_specs=[a_spec, w_spec, w_spec],
        out_specs=o_spec,
        compiler_params=pltpu.CompilerParams(
            dimension_semantics=dims,
            vmem_limit_bytes=vmem_limit),
    )(a_packed, w_rt, w_it)


# ----------------------------------------------------------------------------
# Full SpectralConv3d forward (FFT glue in JAX, corner contraction in Pallas).
# ----------------------------------------------------------------------------
def spectral_conv3d(x, w_r, w_i, modes1, modes2, modes3, *, use_pallas=True):
    """x: (B, Cin, X, Y, Z) float32.
    w_{r,i}: (4, Cin, Cout, modes1, modes2, modes3) float32 (real/imag parts of
    weights1..weights4, in the PyTorch corner order)."""
    B, Cin, X, Y, Z = x.shape
    Cout = w_r.shape[2]
    m1, m2, m3 = modes1, modes2, modes3

    # TODO(synk): rfftn / irfftn have no Pallas TPU equivalent; kept in XLA.
    x_ft = jnp.fft.rfftn(x, axes=(2, 3, 4))            # (B, Cin, X, Y, Z//2+1) c64
    zf = x_ft.shape[4]
    z_dim = min(zf, m3)  # PyTorch module zero-pads missing z-modes the same way.

    def corner(sx, sy):
        c = x_ft[:, :, sx, sy, :z_dim]                 # (B, Cin, m1, m2, z_dim)
        return jnp.pad(c, ((0, 0), (0, 0), (0, 0), (0, 0), (0, m3 - z_dim)))

    # Same corner order as weights1..weights4; all 4 corners packed onto one
    # flattened mode (lane) axis.
    corners = jnp.stack([
        corner(slice(0, m1), slice(0, m2)),
        corner(slice(X - m1, X), slice(0, m2)),
        corner(slice(0, m1), slice(Y - m2, Y)),
        corner(slice(X - m1, X), slice(Y - m2, Y)),
    ], axis=2)                                         # (B, Cin, 4, m1, m2, m3) c64

    M = m1 * m2 * m3
    Mt = 4 * M
    Mp = _round_up(Mt, 128)
    pad_m = Mp - Mt

    a_c = corners.reshape(B, Cin, Mt)
    a_r = jnp.real(a_c).astype(jnp.float32)
    a_i = jnp.imag(a_c).astype(jnp.float32)
    # rows: [a_r (Cin) ; a_i (Cin)], padded once on the lane axis.
    a_packed = jnp.concatenate([a_r, a_i], axis=1)     # (B, 2*Cin, Mt)
    a_packed = jnp.pad(a_packed, ((0, 0), (0, 0), (0, pad_m)))

    # Weights: (4, Cin, Cout, m1,m2,m3) -> (Cin, Cout, 4*M); two slabs only.
    wrf = jnp.transpose(w_r, (1, 2, 0, 3, 4, 5)).reshape(Cin, Cout, Mt)
    wif = jnp.transpose(w_i, (1, 2, 0, 3, 4, 5)).reshape(Cin, Cout, Mt)
    wrf_p = jnp.pad(wrf, ((0, 0), (0, 0), (0, pad_m)))
    wif_p = jnp.pad(wif, ((0, 0), (0, 0), (0, pad_m)))

    if use_pallas:
        o = _spectral_mul_pallas(a_packed, wrf_p, wif_p)        # (B, 2*Cout, Mp)
        o_r = o[:, :Cout, :Mt]
        o_i = o[:, Cout:, :Mt]
    else:
        # pure-JAX reference for the same contraction
        o_r = (jnp.einsum('bim,iom->bom', a_r, wrf)
               - jnp.einsum('bim,iom->bom', a_i, wif))
        o_i = (jnp.einsum('bim,iom->bom', a_r, wif)
               + jnp.einsum('bim,iom->bom', a_i, wrf))

    out_c = (o_r + 1j * o_i).astype(jnp.complex64)
    out_c = out_c.reshape(B, Cout, 4, m1, m2, m3)

    out_ft = jnp.zeros((B, Cout, X, Y, m3), dtype=jnp.complex64)
    out_ft = out_ft.at[:, :, :m1, :m2, :].set(out_c[:, :, 0])
    out_ft = out_ft.at[:, :, X - m1:, :m2, :].set(out_c[:, :, 1])
    out_ft = out_ft.at[:, :, :m1, Y - m2:, :].set(out_c[:, :, 2])
    out_ft = out_ft.at[:, :, X - m1:, Y - m2:, :].set(out_c[:, :, 3])

    # irfftn with s zero-pads/crops out_ft along each axis (matches torch).
    return jnp.fft.irfftn(out_ft, s=(X, Y, Z), axes=(2, 3, 4))


# ----------------------------------------------------------------------------
if __name__ == "__main__":
    # Module config (small, consistent with SpectralConv3d.__init__/forward).
    B, Cin, Cout = 2, 4, 4
    X = Y = Z = 16
    m1, m2, m3 = 4, 4, 3

    key = jax.random.PRNGKey(0)
    kx, kwr, kwi = jax.random.split(key, 3)

    x = jax.random.normal(kx, (B, Cin, X, Y, Z), dtype=jnp.float32)

    # weights1..4 ~ scale * torch.rand(..., dtype=cfloat): uniform [0,1) real+imag.
    scale = 1.0 / (Cin * Cout)
    w_r = scale * jax.random.uniform(kwr, (4, Cin, Cout, m1, m2, m3), dtype=jnp.float32)
    w_i = scale * jax.random.uniform(kwi, (4, Cin, Cout, m1, m2, m3), dtype=jnp.float32)

    fwd = jax.jit(functools.partial(spectral_conv3d, modes1=m1, modes2=m2, modes3=m3))
    out = jax.block_until_ready(fwd(x, w_r, w_i))
    assert out.shape == (B, Cout, X, Y, Z), out.shape

    # Cross-check Pallas contraction against pure-JAX einsum reference.
    ref = jax.block_until_ready(
        spectral_conv3d(x, w_r, w_i, m1, m2, m3, use_pallas=False))
    np.testing.assert_allclose(np.asarray(out), np.asarray(ref), atol=1e-4, rtol=1e-4)

    print("KERNEL_OK")
</pallas_src>

<mosaic_0001>
module attributes {stable_mosaic.version = 11 : i64} {
  func.func @_spectral_mul_kernel(%arg0: i32, %arg1: i32, %arg2: memref<1x8x256xf32, #tpu.memory_space<vmem>>, %arg3: memref<1x4x4x256xf32, #tpu.memory_space<vmem>>, %arg4: memref<1x4x4x256xf32, #tpu.memory_space<vmem>>, %arg5: memref<1x8x256xf32, #tpu.memory_space<vmem>>) attributes {dimension_semantics = [#tpu.dimension_semantics<arbitrary>, #tpu.dimension_semantics<parallel>], iteration_bounds = array<i64: 1, 2>, scalar_prefetch = 0 : i64, scratch_operands = 0 : i64, tpu.core_type = #tpu.core_type<tc>, window_params = [{transform_indices = @transform_0, window_bounds = array<i64: 1, 8, 256>}, {transform_indices = @transform_1, window_bounds = array<i64: 1, 4, 4, 256>}, {transform_indices = @transform_2, window_bounds = array<i64: 1, 4, 4, 256>}, {transform_indices = @transform_3, window_bounds = array<i64: 1, 8, 256>}]} {
    %c0 = arith.constant 0 : index
    %c0_0 = arith.constant 0 : index
    %c0_1 = arith.constant 0 : index
    %0 = vector.load %arg2[%c0, %c0_0, %c0_1] : memref<1x8x256xf32, #tpu.memory_space<vmem>>, vector<1x1x256xf32>
    %1 = vector.shape_cast %0 : vector<1x1x256xf32> to vector<1x256xf32>
    %c0_2 = arith.constant 0 : index
    %c4 = arith.constant 4 : index
    %c0_3 = arith.constant 0 : index
    %2 = vector.load %arg2[%c0_2, %c4, %c0_3] : memref<1x8x256xf32, #tpu.memory_space<vmem>>, vector<1x1x256xf32>
    %3 = vector.shape_cast %2 : vector<1x1x256xf32> to vector<1x256xf32>
    %c0_4 = arith.constant 0 : index
    %c0_5 = arith.constant 0 : index
    %c0_6 = arith.constant 0 : index
    %c0_7 = arith.constant 0 : index
    %4 = vector.load %arg3[%c0_4, %c0_5, %c0_6, %c0_7] : memref<1x4x4x256xf32, #tpu.memory_space<vmem>>, vector<1x1x4x256xf32>
    %5 = vector.shape_cast %4 : vector<1x1x4x256xf32> to vector<4x256xf32>
    %c0_8 = arith.constant 0 : index
    %c0_9 = arith.constant 0 : index
    %c0_10 = arith.constant 0 : index
    %c0_11 = arith.constant 0 : index
    %6 = vector.load %arg4[%c0_8, %c0_9, %c0_10, %c0_11] : memref<1x4x4x256xf32, #tpu.memory_space<vmem>>, vector<1x1x4x256xf32>
    %7 = vector.shape_cast %6 : vector<1x1x4x256xf32> to vector<4x256xf32>
    %8 = vector.broadcast %1 : vector<1x256xf32> to vector<4x256xf32>
    %9 = arith.mulf %8, %5 : vector<4x256xf32>
    %10 = vector.broadcast %3 : vector<1x256xf32> to vector<4x256xf32>
    %11 = arith.mulf %10, %7 : vector<4x256xf32>
    %12 = arith.subf %9, %11 : vector<4x256xf32>
    %13 = vector.broadcast %1 : vector<1x256xf32> to vector<4x256xf32>
    %14 = arith.mulf %13, %7 : vector<4x256xf32>
    %15 = vector.broadcast %3 : vector<1x256xf32> to vector<4x256xf32>
    %16 = arith.mulf %15, %5 : vector<4x256xf32>
    %17 = arith.addf %14, %16 : vector<4x256xf32>
    %c1_i32 = arith.constant 1 : i32
    %c0_12 = arith.constant 0 : index
    %18 = arith.index_cast %c1_i32 : i32 to index
    %c0_13 = arith.constant 0 : index
    %19 = vector.load %arg2[%c0_12, %18, %c0_13] : memref<1x8x256xf32, #tpu.memory_space<vmem>>, vector<1x1x256xf32>
    %20 = vector.shape_cast %19 : vector<1x1x256xf32> to vector<1x256xf32>
    %c4_i32 = arith.constant 4 : i32
    %21 = arith.addi %c4_i32, %c1_i32 : i32
    %c0_14 = arith.constant 0 : index
    %22 = arith.index_cast %21 : i32 to index
    %c0_15 = arith.constant 0 : index
    %23 = vector.load %arg2[%c0_14, %22, %c0_15] : memref<1x8x256xf32, #tpu.memory_space<vmem>>, vector<1x1x256xf32>
    %24 = vector.shape_cast %23 : vector<1x1x256xf32> to vector<1x256xf32>
    %c0_16 = arith.constant 0 : index
    %25 = arith.index_cast %c1_i32 : i32 to index
    %c0_17 = arith.constant 0 : index
    %c0_18 = arith.constant 0 : index
    %26 = vector.load %arg3[%c0_16, %25, %c0_17, %c0_18] : memref<1x4x4x256xf32, #tpu.memory_space<vmem>>, vector<1x1x4x256xf32>
    %27 = vector.shape_cast %26 : vector<1x1x4x256xf32> to vector<4x256xf32>
    %c0_19 = arith.constant 0 : index
    %28 = arith.index_cast %c1_i32 : i32 to index
    %c0_20 = arith.constant 0 : index
    %c0_21 = arith.constant 0 : index
    %29 = vector.load %arg4[%c0_19, %28, %c0_20, %c0_21] : memref<1x4x4x256xf32, #tpu.memory_space<vmem>>, vector<1x1x4x256xf32>
    %30 = vector.shape_cast %29 : vector<1x1x4x256xf32> to vector<4x256xf32>
    %31 = vector.broadcast %20 : vector<1x256xf32> to vector<4x256xf32>
    %32 = arith.mulf %31, %27 : vector<4x256xf32>
    %33 = vector.broadcast %24 : vector<1x256xf32> to vector<4x256xf32>
    %34 = arith.mulf %33, %30 : vector<4x256xf32>
    %35 = arith.subf %32, %34 : vector<4x256xf32>
    %36 = arith.addf %12, %35 : vector<4x256xf32>
    %37 = vector.broadcast %20 : vector<1x256xf32> to vector<4x256xf32>
    %38 = arith.mulf %37, %30 : vector<4x256xf32>
    %39 = vector.broadcast %24 : vector<1x256xf32> to vector<4x256xf32>
    %40 = arith.mulf %39, %27 : vector<4x256xf32>
    %41 = arith.addf %38, %40 : vector<4x256xf32>
    %42 = arith.addf %17, %41 : vector<4x256xf32>
    %c2_i32 = arith.constant 2 : i32
    %c0_22 = arith.constant 0 : index
    %43 = arith.index_cast %c2_i32 : i32 to index
    %c0_23 = arith.constant 0 : index
    %44 = vector.load %arg2[%c0_22, %43, %c0_23] : memref<1x8x256xf32, #tpu.memory_space<vmem>>, vector<1x1x256xf32>
    %45 = vector.shape_cast %44 : vector<1x1x256xf32> to vector<1x256xf32>
    %c4_i32_24 = arith.constant 4 : i32
    %46 = arith.addi %c4_i32_24, %c2_i32 : i32
    %c0_25 = arith.constant 0 : index
    %47 = arith.index_cast %46 : i32 to index
    %c0_26 = arith.constant 0 : index
    %48 = vector.load %arg2[%c0_25, %47, %c0_26] : memref<1x8x256xf32, #tpu.memory_space<vmem>>, vector<1x1x256xf32>
    %49 = vector.shape_cast %48 : vector<1x1x256xf32> to vector<1x256xf32>
    %c0_27 = arith.constant 0 : index
    %50 = arith.index_cast %c2_i32 : i32 to index
    %c0_28 = arith.constant 0 : index
    %c0_29 = arith.constant 0 : index
    %51 = vector.load %arg3[%c0_27, %50, %c0_28, %c0_29] : memref<1x4x4x256xf32, #tpu.memory_space<vmem>>, vector<1x1x4x256xf32>
    %52 = vector.shape_cast %51 : vector<1x1x4x256xf32> to vector<4x256xf32>
    %c0_30 = arith.constant 0 : index
    %53 = arith.index_cast %c2_i32 : i32 to index
    %c0_31 = arith.constant 0 : index
    %c0_32 = arith.constant 0 : index
    %54 = vector.load %arg4[%c0_30, %53, %c0_31, %c0_32] : memref<1x4x4x256xf32, #tpu.memory_space<vmem>>, vector<1x1x4x256xf32>
    %55 = vector.shape_cast %54 : vector<1x1x4x256xf32> to vector<4x256xf32>
    %56 = vector.broadcast %45 : vector<1x256xf32> to vector<4x256xf32>
    %57 = arith.mulf %56, %52 : vector<4x256xf32>
    %58 = vector.broadcast %49 : vector<1x256xf32> to vector<4x256xf32>
    %59 = arith.mulf %58, %55 : vector<4x256xf32>
    %60 = arith.subf %57, %59 : vector<4x256xf32>
    %61 = arith.addf %36, %60 : vector<4x256xf32>
    %62 = vector.broadcast %45 : vector<1x256xf32> to vector<4x256xf32>
    %63 = arith.mulf %62, %55 : vector<4x256xf32>
    %64 = vector.broadcast %49 : vector<1x256xf32> to vector<4x256xf32>
    %65 = arith.mulf %64, %52 : vector<4x256xf32>
    %66 = arith.addf %63, %65 : vector<4x256xf32>
    %67 = arith.addf %42, %66 : vector<4x256xf32>
    %c3_i32 = arith.constant 3 : i32
    %c0_33 = arith.constant 0 : index
    %68 = arith.index_cast %c3_i32 : i32 to index
    %c0_34 = arith.constant 0 : index
    %69 = vector.load %arg2[%c0_33, %68, %c0_34] : memref<1x8x256xf32, #tpu.memory_space<vmem>>, vector<1x1x256xf32>
    %70 = vector.shape_cast %69 : vector<1x1x256xf32> to vector<1x256xf32>
    %c4_i32_35 = arith.constant 4 : i32
    %71 = arith.addi %c4_i32_35, %c3_i32 : i32
    %c0_36 = arith.constant 0 : index
    %72 = arith.index_cast %71 : i32 to index
    %c0_37 = arith.constant 0 : index
    %73 = vector.load %arg2[%c0_36, %72, %c0_37] : memref<1x8x256xf32, #tpu.memory_space<vmem>>, vector<1x1x256xf32>
    %74 = vector.shape_cast %73 : vector<1x1x256xf32> to vector<1x256xf32>
    %c0_38 = arith.constant 0 : index
    %75 = arith.index_cast %c3_i32 : i32 to index
    %c0_39 = arith.constant 0 : index
    %c0_40 = arith.constant 0 : index
    %76 = vector.load %arg3[%c0_38, %75, %c0_39, %c0_40] : memref<1x4x4x256xf32, #tpu.memory_space<vmem>>, vector<1x1x4x256xf32>
    %77 = vector.shape_cast %76 : vector<1x1x4x256xf32> to vector<4x256xf32>
    %c0_41 = arith.constant 0 : index
    %78 = arith.index_cast %c3_i32 : i32 to index
    %c0_42 = arith.constant 0 : index
    %c0_43 = arith.constant 0 : index
    %79 = vector.load %arg4[%c0_41, %78, %c0_42, %c0_43] : memref<1x4x4x256xf32, #tpu.memory_space<vmem>>, vector<1x1x4x256xf32>
    %80 = vector.shape_cast %79 : vector<1x1x4x256xf32> to vector<4x256xf32>
    %81 = vector.broadcast %70 : vector<1x256xf32> to vector<4x256xf32>
    %82 = arith.mulf %81, %77 : vector<4x256xf32>
    %83 = vector.broadcast %74 : vector<1x256xf32> to vector<4x256xf32>
    %84 = arith.mulf %83, %80 : vector<4x256xf32>
    %85 = arith.subf %82, %84 : vector<4x256xf32>
    %86 = arith.addf %61, %85 : vector<4x256xf32>
    %87 = vector.broadcast %70 : vector<1x256xf32> to vector<4x256xf32>
    %88 = arith.mulf %87, %80 : vector<4x256xf32>
    %89 = vector.broadcast %74 : vector<1x256xf32> to vector<4x256xf32>
    %90 = arith.mulf %89, %77 : vector<4x256xf32>
    %91 = arith.addf %88, %90 : vector<4x256xf32>
    %92 = arith.addf %67, %91 : vector<4x256xf32>
    %c3_i32_44 = arith.constant 3 : i32
    %93 = tpu.concatenate %86, %92 in 0 : vector<4x256xf32>, vector<4x256xf32> -> vector<8x256xf32>
    %c0_45 = arith.constant 0 : index
    %c0_46 = arith.constant 0 : index
    %c0_47 = arith.constant 0 : index
    %94 = vector.load %arg5[%c0_45, %c0_46, %c0_47] : memref<1x8x256xf32, #tpu.memory_space<vmem>>, vector<1x8x256xf32>
    %95 = vector.shape_cast %94 : vector<1x8x256xf32> to vector<8x256xf32>
    %96 = vector.shape_cast %93 : vector<8x256xf32> to vector<1x8x256xf32>
    tpu.vector_store %arg5[%c0_45, %c0_46, %c0_47], %96 {strides = array<i32>} : memref<1x8x256xf32, #tpu.memory_space<vmem>>, vector<1x8x256xf32>,
    return
  }
  func.func @transform_0(%arg0: i32, %arg1: i32) -> (i32, i32, i32) {
    %c0_i32 = arith.constant 0 : i32
    %c0_i32_0 = arith.constant 0 : i32
    return %arg1, %c0_i32, %arg0 : i32, i32, i32
  }
  func.func @transform_1(%arg0: i32, %arg1: i32) -> (i32, i32, i32, i32) {
    %c0_i32 = arith.constant 0 : i32
    %c0_i32_0 = arith.constant 0 : i32
    %c0_i32_1 = arith.constant 0 : i32
    %c0_i32_2 = arith.constant 0 : i32
    return %arg0, %c0_i32, %c0_i32_0, %c0_i32_1 : i32, i32, i32, i32
  }
  func.func @transform_2(%arg0: i32, %arg1: i32) -> (i32, i32, i32, i32) {
    %c0_i32 = arith.constant 0 : i32
    %c0_i32_0 = arith.constant 0 : i32
    %c0_i32_1 = arith.constant 0 : i32
    %c0_i32_2 = arith.constant 0 : i32
    return %arg0, %c0_i32, %c0_i32_0, %c0_i32_1 : i32, i32, i32, i32
  }
  func.func @transform_3(%arg0: i32, %arg1: i32) -> (i32, i32, i32) {
    %c0_i32 = arith.constant 0 : i32
    %c0_i32_0 = arith.constant 0 : i32
    return %arg1, %c0_i32, %arg0 : i32, i32, i32
  }
}

</mosaic_0001>

<llo_original>
// kernel: spectral_conv3d.1
$region0: #{spectral_conv3d.1}
  #allocation0 [shape = 'u32[]', space=smem, size = 0x4, offset = 0x4, fixed_abs, tag = 'smem constant byte address 0x4 - core index']
  #allocation1 [shape = 'u32[144,128]{1,0:T(1,128)}', space=vmem, size = 0x12000, scoped, tag = 'internal scratch']
  %s0 = inlined_call_operand.vmem [shape: f32[2,8,256], index: 0, kind: input, shape index: {}]
  %s1 = inlined_call_operand.vmem [shape: f32[1,4,4,256], index: 1, kind: input, shape index: {}]
  %s2 = inlined_call_operand.vmem [shape: f32[1,4,4,256], index: 2, kind: input, shape index: {}]
  %s3 = inlined_call_operand.vmem [shape: f32[2,8,256], index: 3, kind: output, shape index: {}]
  %s4 = sld [smem:[#allocation0]]
  $region45: #{spectral_conv3d.1} parent=0
    _
  %s6 = ssub.s32 1, %s4
  %s7 = scalar_select 0, %s6, %s4
  loop: start=0, step=1, limit=4
  $region2: #{spectral_conv3d.1} parent=0 // loop_pre_header
    _
  $region3: #{spectral_conv3d.1} parent=0 // loop_header
    %s9 = sphi 0, %s13
    %p10 = scmp.ge.s32.totalorder %s9, 4
    %s16 = sphi 0, %s28
    %s17 = sphi 0, %s24
    %s18 = sphi 0, %s16
    %s19 = sphi 0, %s17
    %s20 = sphi 0, %s18
    %s21 = sphi 0, %s19
    %s33 = sphi 0, %s35
    %s36 = sphi 0, %s33
    %s37 = sphi 0, %s36
    %s53 = sphi 0, %s37
    %s59 = sphi 0, %s61
    %s62 = sphi 0, %s59
    %s63 = sphi 0, %s62
    %s79 = sphi 0, %s63
    %s85 = sphi 0, %s87
    %s88 = sphi 0, %s85
    %s89 = sphi 0, %s88
    %s105 = sphi 0, %s89
    %s113 = sphi 0, %s115
    %s116 = sphi 0, %s113
    %s117 = sphi 0, %s116
    %s133 = sphi 0, %s117
  $region4: #{spectral_conv3d.1} parent=0 // loop_header_branch
    %12 = sbr.rel (%p10) target = $region8
  $region5: #{spectral_conv3d.1} parent=0 // loop_body
    %s14 = ssub.s32 %s9, 1
    %s15 = ssub.s32 %s9, 2
    %s22 = sadd.s32 1, %s17
    %p23 = scmp.ge.s32.totalorder %s22, 2
    %s24 = scalar_select %p23, 0, %s22
    %s25 = sadd.s32 1, %s16
    %s26 = scalar_select %p23, %s25, %s16
    %p27 = scmp.ge.s32.totalorder %s26, 1
    %s28 = scalar_select %p27, 0, %s26
    %s29 = ssub.s32 %s17, %s24
    %s30 = ssub.s32 %s16, %s28
    %s31 = sor.u32 %s29, %s30
    %p32 = scmp.eq.s32.totalorder %s31, 0
    %s34 = sadd.s32 %s33, 1
    %s35 = scalar_select %p32, %s33, %s34
    %p38 = pneg %p32
    %p39 = scmp.eq.s32.totalorder %s9, 1
    %p40 = por %p38, %p39
    %p41 = scmp.ne.s32.totalorder %s33, %s36
    %p42 = scmp.eq.s32.totalorder %s9, 0
    %p43 = por %p41, %p42
    %p44 = scmp.ne.s32.totalorder %s33, %s36
    %p45 = scmp.eq.s32.totalorder %s14, 1
    %p46 = por %p44, %p45
    %p47 = scmp.ne.s32.totalorder %s36, %s37
    %p48 = scmp.eq.s32.totalorder %s14, 0
    %p49 = por %p47, %p48
    %p50 = scmp.ne.s32.totalorder %s36, %s37
    %p51 = scmp.eq.s32.totalorder %s15, 1
    %p52 = por %p50, %p51
    %p54 = scmp.ne.s32.totalorder %s37, %s53
    %p55 = scmp.eq.s32.totalorder %s15, 0
    %p56 = por %p54, %p55
    %s57 = ssub.s32 %s16, %s28
    %p58 = scmp.eq.s32.totalorder %s57, 0
    %s60 = sadd.s32 %s59, 1
    %s61 = scalar_select %p58, %s59, %s60
    %p64 = pneg %p58
    %p65 = scmp.eq.s32.totalorder %s9, 1
    %p66 = por %p64, %p65
    %p67 = scmp.ne.s32.totalorder %s59, %s62
    %p68 = scmp.eq.s32.totalorder %s9, 0
    %p69 = por %p67, %p68
    %p70 = scmp.ne.s32.totalorder %s59, %s62
    %p71 = scmp.eq.s32.totalorder %s14, 1
    %p72 = por %p70, %p71
    %p73 = scmp.ne.s32.totalorder %s62, %s63
    %p74 = scmp.eq.s32.totalorder %s14, 0
    %p75 = por %p73, %p74
    %p76 = scmp.ne.s32.totalorder %s62, %s63
    %p77 = scmp.eq.s32.totalorder %s15, 1
    %p78 = por %p76, %p77
    %p80 = scmp.ne.s32.totalorder %s63, %s79
    %p81 = scmp.eq.s32.totalorder %s15, 0
    %p82 = por %p80, %p81
    %s83 = ssub.s32 %s16, %s28
    %p84 = scmp.eq.s32.totalorder %s83, 0
    %s86 = sadd.s32 %s85, 1
    %s87 = scalar_select %p84, %s85, %s86
    %p90 = pneg %p84
    %p91 = scmp.eq.s32.totalorder %s9, 1
    %p92 = por %p90, %p91
    %p93 = scmp.ne.s32.totalorder %s85, %s88
    %p94 = scmp.eq.s32.totalorder %s9, 0
    %p95 = por %p93, %p94
    %p96 = scmp.ne.s32.totalorder %s85, %s88
    %p97 = scmp.eq.s32.totalorder %s14, 1
    %p98 = por %p96, %p97
    %p99 = scmp.ne.s32.totalorder %s88, %s89
    %p100 = scmp.eq.s32.totalorder %s14, 0
    %p101 = por %p99, %p100
    %p102 = scmp.ne.s32.totalorder %s88, %s89
    %p103 = scmp.eq.s32.totalorder %s15, 1
    %p104 = por %p102, %p103
    %p106 = scmp.ne.s32.totalorder %s89, %s105
    %p107 = scmp.eq.s32.totalorder %s15, 0
    %p108 = por %p106, %p107
    %s109 = ssub.s32 %s17, %s24
    %s110 = ssub.s32 %s16, %s28
    %s111 = sor.u32 %s109, %s110
    %p112 = scmp.eq.s32.totalorder %s111, 0
    %s114 = sadd.s32 %s113, 1
    %s115 = scalar_select %p112, %s113, %s114
    %p118 = pneg %p112
    %p119 = scmp.eq.s32.totalorder %s9, 1
    %p120 = por %p118, %p119
    %p121 = scmp.ne.s32.totalorder %s113, %s116
    %p122 = scmp.eq.s32.totalorder %s9, 0
    %p123 = por %p121, %p122
    %p124 = scmp.ne.s32.totalorder %s113, %s116
    %p125 = scmp.eq.s32.totalorder %s14, 1
    %p126 = por %p124, %p125
    %p127 = scmp.ne.s32.totalorder %s116, %s117
    %p128 = scmp.eq.s32.totalorder %s14, 0
    %p129 = por %p127, %p128
    %p130 = scmp.ne.s32.totalorder %s116, %s117
    %p131 = scmp.eq.s32.totalorder %s15, 1
    %p132 = por %p130, %p131
    %p134 = scmp.ne.s32.totalorder %s117, %s133
    %p135 = scmp.eq.s32.totalorder %s15, 0
    %p136 = por %p134, %p135
    %p137 = scmp.le.s32.totalorder 1, %s9
    %p138 = scmp.lt.s32.totalorder %s9, 3
    %p139 = pnand %p137, %p138
    %p140 = pneg %p139
    // Predicated region
    $region9: #{spectral_conv3d.1} parent=5 // pred_check
      _
    $region10: #{spectral_conv3d.1} parent=5 // pred_check_branch
      %142 = sbr.rel (%p139) target = $region12
    $region11: #{spectral_conv3d.1} parent=5 // pred_region
      %s143 = ssub.s32 %s9, 1
      // Predicated region
      $region13: #{spectral_conv3d.1} parent=11 // pred_check
        %p144 = pneg %p75
      $region14: #{spectral_conv3d.1} parent=11 // pred_check_branch
        %146 = sbr.rel (%p144) target = $region16
      $region15: #{spectral_conv3d.1} parent=11 // pred_region
        %p147 = scmp.lt.s32.totalorder %s18, 0
        %s148 = scalar_select %p147, %s18, 0
        %s149 = smul.addr %s148, 8
        %s150 = smul.addr %s149, 4
        %s151 = scalar_lea.vmem %s1, %s150
      $region16: #{spectral_conv3d.1} parent=11 // pred_fallthru
        _
      // Predicated region
      $region17: #{spectral_conv3d.1} parent=11 // pred_check
        %p152 = pneg %p101
      $region18: #{spectral_conv3d.1} parent=11 // pred_check_branch
        %154 = sbr.rel (%p152) target = $region20
      $region19: #{spectral_conv3d.1} parent=11 // pred_region
        %p155 = scmp.lt.s32.totalorder %s18, 0
        %s156 = scalar_select %p155, %s18, 0
        %s157 = smul.addr %s156, 8
        %s158 = smul.addr %s157, 4
        %s159 = scalar_lea.vmem %s2, %s158
      $region20: #{spectral_conv3d.1} parent=11 // pred_fallthru
        _
    $region12: #{spectral_conv3d.1} parent=5 // pred_fallthru
      _
    %p160 = scmp.lt.s32.totalorder %s9, 2
    // Predicated region
    $region21: #{spectral_conv3d.1} parent=5 // pred_check
      %p161 = pneg %p160
    $region22: #{spectral_conv3d.1} parent=5 // pred_check_branch
      %163 = sbr.rel (%p161) target = $region24
    $region23: #{spectral_conv3d.1} parent=5 // pred_region
      // Predicated region
      $region25: #{spectral_conv3d.1} parent=23 // pred_check
        %p164 = pneg %p43
      $region26: #{spectral_conv3d.1} parent=23 // pred_check_branch
        %166 = sbr.rel (%p164) target = $region28
      $region27: #{spectral_conv3d.1} parent=23 // pred_region
        %s167 = smul.u32 2, %s16
        %p168 = scmp.lt.s32.totalorder %s17, 1
        %s169 = scalar_select %p168, %s17, 1
        %p170 = scmp.lt.s32.totalorder %s167, 1
        %s171 = scalar_select %p170, %s167, 1
        %s172 = smul.addr %s169, 2
        %s173 = sadd.s32 %s171, %s172
        %s174 = smul.addr %s173, 8
        %s175 = scalar_lea.vmem %s0, %s174
        %s176 = smul.u32 2, %s16
      $region28: #{spectral_conv3d.1} parent=23 // pred_fallthru
        _
    $region24: #{spectral_conv3d.1} parent=5 // pred_fallthru
      _
    %p177 = scmp.le.s32.totalorder 1, %s9
    %p178 = scmp.lt.s32.totalorder %s9, 3
    %p179 = pnand %p177, %p178
    %p180 = pneg %p179
    // Predicated region
    $region29: #{spectral_conv3d.1} parent=5 // pred_check
      _
    $region30: #{spectral_conv3d.1} parent=5 // pred_check_branch
      %182 = sbr.rel (%p179) target = $region32
    $region31: #{spectral_conv3d.1} parent=5 // pred_region
      %s183 = ssub.s32 %s9, 1
      %s184 = smul.u32 2, %s18
      %p185 = scmp.lt.s32.totalorder %s19, 1
      %s186 = scalar_select %p185, %s19, 1
      %p187 = scmp.lt.s32.totalorder %s184, 1
      %s188 = scalar_select %p187, %s184, 1
      %s189 = smul.addr %s186, 2
      %s190 = sadd.s32 %s188, %s189
      %s191 = smul.addr %s190, 8
      %s192 = scalar_lea.vmem %s0, %s191
      %p193 = pneg %p49
      %p194 = pneg %p46
      %p195 = scmp.lt.s32.totalorder %s18, 0
      %s196 = scalar_select %p195, %s18, 0
      %s197 = smul.addr %s196, 8
      %s198 = smul.addr %s197, 4
      %s199 = scalar_lea.vmem %s1, %s198
      %p200 = pneg %p75
      %p201 = pneg %p72
      %p202 = scmp.lt.s32.totalorder %s18, 0
      %s203 = scalar_select %p202, %s18, 0
      %s204 = smul.addr %s203, 8
      %s205 = smul.addr %s204, 4
      %s206 = scalar_lea.vmem %s2, %s205
      %p207 = pneg %p101
      %p208 = pneg %p98
      %p209 = pneg %p129
      %p210 = pneg %p126
      %s211 = smul.u32 2, %s18
      %p212 = scmp.lt.s32.totalorder %s19, 1
      %s213 = scalar_select %p212, %s19, 1
      %p214 = scmp.lt.s32.totalorder %s211, 1
      %s215 = scalar_select %p214, %s211, 1
      %s216 = smul.addr %s213, 2
      %s217 = sadd.s32 %s215, %s216
      %s218 = smul.addr %s217, 8
      %s219 = scalar_lea.vmem %s3, %s218
      %s220 = smul.u32 2, %s18
      %p221 = scmp.lt.s32.totalorder %s19, 1
      %s222 = scalar_select %p221, %s19, 1
      %p223 = scmp.lt.s32.totalorder %s220, 1
      %s224 = scalar_select %p223, %s220, 1
      %s225 = smul.addr %s222, 2
      %s226 = sadd.s32 %s224, %s225
      %s227 = smul.addr %s226, 8
      %s228 = scalar_lea.vmem %s0, %s227
      %s229 = smul.u32 2, %s18
      %p230 = scmp.lt.s32.totalorder %s18, 0
      %s231 = scalar_select %p230, %s18, 0
      %s232 = smul.addr %s231, 8
      %s233 = smul.addr %s232, 4
      %s234 = scalar_lea.vmem %s1, %s233
      %p235 = scmp.lt.s32.totalorder %s18, 0
      %s236 = scalar_select %p235, %s18, 0
      %s237 = smul.addr %s236, 8
      %s238 = smul.addr %s237, 4
      %s239 = scalar_lea.vmem %s2, %s238
      %s240 = smul.u32 2, %s18
      %p241 = scmp.lt.s32.totalorder %s19, 1
      %s242 = scalar_select %p241, %s19, 1
      %p243 = scmp.lt.s32.totalorder %s240, 1
      %s244 = scalar_select %p243, %s240, 1
      %s245 = smul.addr %s242, 2
      %s246 = sadd.s32 %s244, %s245
      %s247 = smul.addr %s246, 8
      %s248 = scalar_lea.vmem %s3, %s247
      %s249 = smul.u32 2, %s18
      %v250 = vld [vmem:[%s228] ss:$8 sm:$0x3]
      %s251 = scalar_lea.vmem %s228, 4
      %v252 = vld [vmem:[%s251] ss:$8 sm:$0x3]
      %v253 = vld [vmem:[%s234] sm:$0xff]
      %v254 = vld [vmem:[%s239] sm:$0xff]
      %v256 = vlaneseq
      %v257 = vshrl.u32 %v256, 7
      %v258 = vsub.s32 0, %v257
      %v259 = vrot.slane %v250, %v258
      %v260 = vlaneseq
      %v261 = vshrl.u32 %v260, 7
      %v262 = vsub.s32 1, %v261
      %v263 = vrot.slane %v250, %v262
      %v267 = vcombine.high %v253, %v253
      %v269 = vmul.f32 %v259, %v253
      %v270 = vmul.f32 %v263, %v267
      %v272 = vlaneseq
      %v273 = vshrl.u32 %v272, 7
      %v274 = vsub.s32 0, %v273
      %v275 = vrot.slane %v252, %v274
      %v276 = vlaneseq
      %v277 = vshrl.u32 %v276, 7
      %v278 = vsub.s32 1, %v277
      %v279 = vrot.slane %v252, %v278
      %v283 = vcombine.high %v254, %v254
      %v285 = vmul.f32 %v275, %v254
      %v286 = vmul.f32 %v279, %v283
      %v287 = vsub.f32 %v269, %v285
      %v288 = vsub.f32 %v270, %v286
      %v289 = vmul.f32 %v259, %v254
      %v290 = vmul.f32 %v263, %v283
      %v291 = vmul.f32 %v275, %v253
      %v292 = vmul.f32 %v279, %v267
      %v293 = vadd.f32 %v289, %v291
      %v294 = vadd.f32 %v290, %v292
      %s295 = scalar_lea.vmem %s228, 1
      %v296 = vld [vmem:[%s295] ss:$8 sm:$0x3]
      %s297 = scalar_lea.vmem %s228, 5
      %v298 = vld [vmem:[%s297] ss:$8 sm:$0x3]
      %s299 = scalar_lea.vmem %s234, 8
      %v300 = vld [vmem:[%s299] sm:$0xff]
      %s301 = scalar_lea.vmem %s239, 8
      %v302 = vld [vmem:[%s301] sm:$0xff]
      %v304 = vlaneseq
      %v305 = vshrl.u32 %v304, 7
      %v306 = vsub.s32 0, %v305
      %v307 = vrot.slane %v296, %v306
      %v308 = vlaneseq
      %v309 = vshrl.u32 %v308, 7
      %v310 = vsub.s32 1, %v309
      %v311 = vrot.slane %v296, %v310
      %v315 = vcombine.high %v300, %v300
      %v317 = vmul.f32 %v307, %v300
      %v318 = vmul.f32 %v311, %v315
      %v320 = vlaneseq
      %v321 = vshrl.u32 %v320, 7
      %v322 = vsub.s32 0, %v321
      %v323 = vrot.slane %v298, %v322
      %v324 = vlaneseq
      %v325 = vshrl.u32 %v324, 7
      %v326 = vsub.s32 1, %v325
      %v327 = vrot.slane %v298, %v326
      %v331 = vcombine.high %v302, %v302
      %v333 = vmul.f32 %v323, %v302
      %v334 = vmul.f32 %v327, %v331
      %v335 = vsub.f32 %v317, %v333
      %v336 = vsub.f32 %v318, %v334
      %v337 = vadd.f32 %v287, %v335
      %v338 = vadd.f32 %v288, %v336
      %v339 = vmul.f32 %v307, %v302
      %v340 = vmul.f32 %v311, %v331
      %v341 = vmul.f32 %v323, %v300
      %v342 = vmul.f32 %v327, %v315
      %v343 = vadd.f32 %v339, %v341
      %v344 = vadd.f32 %v340, %v342
      %v345 = vadd.f32 %v293, %v343
      %v346 = vadd.f32 %v294, %v344
      %s347 = scalar_lea.vmem %s228, 2
      %v348 = vld [vmem:[%s347] ss:$8 sm:$0x3]
      %s349 = scalar_lea.vmem %s228, 6
      %v350 = vld [vmem:[%s349] ss:$8 sm:$0x3]
      %s351 = scalar_lea.vmem %s234, 16
      %v352 = vld [vmem:[%s351] sm:$0xff]
      %s353 = scalar_lea.vmem %s239, 16
      %v354 = vld [vmem:[%s353] sm:$0xff]
      %v356 = vlaneseq
      %v357 = vshrl.u32 %v356, 7
      %v358 = vsub.s32 0, %v357
      %v359 = vrot.slane %v348, %v358
      %v360 = vlaneseq
      %v361 = vshrl.u32 %v360, 7
      %v362 = vsub.s32 1, %v361
      %v363 = vrot.slane %v348, %v362
      %v367 = vcombine.high %v352, %v352
      %v369 = vmul.f32 %v359, %v352
      %v370 = vmul.f32 %v363, %v367
      %v372 = vlaneseq
      %v373 = vshrl.u32 %v372, 7
      %v374 = vsub.s32 0, %v373
      %v375 = vrot.slane %v350, %v374
      %v376 = vlaneseq
      %v377 = vshrl.u32 %v376, 7
      %v378 = vsub.s32 1, %v377
      %v379 = vrot.slane %v350, %v378
      %v383 = vcombine.high %v354, %v354
      %v385 = vmul.f32 %v375, %v354
      %v386 = vmul.f32 %v379, %v383
      %v387 = vsub.f32 %v369, %v385
      %v388 = vsub.f32 %v370, %v386
      %v389 = vadd.f32 %v337, %v387
      %v390 = vadd.f32 %v338, %v388
      %v391 = vmul.f32 %v359, %v354
      %v392 = vmul.f32 %v363, %v383
      %v393 = vmul.f32 %v375, %v352
      %v394 = vmul.f32 %v379, %v367
      %v395 = vadd.f32 %v391, %v393
      %v396 = vadd.f32 %v392, %v394
      %v397 = vadd.f32 %v345, %v395
      %v398 = vadd.f32 %v346, %v396
      %s399 = scalar_lea.vmem %s228, 3
      %v400 = vld [vmem:[%s399] ss:$8 sm:$0x3]
      %s401 = scalar_lea.vmem %s228, 7
      %v402 = vld [vmem:[%s401] ss:$8 sm:$0x3]
      %s403 = scalar_lea.vmem %s234, 24
      %v404 = vld [vmem:[%s403] sm:$0xff]
      %s405 = scalar_lea.vmem %s239, 24
      %v406 = vld [vmem:[%s405] sm:$0xff]
      %v408 = vlaneseq
      %v409 = vshrl.u32 %v408, 7
      %v410 = vsub.s32 0, %v409
      %v411 = vrot.slane %v400, %v410
      %v412 = vlaneseq
      %v413 = vshrl.u32 %v412, 7
      %v414 = vsub.s32 1, %v413
      %v415 = vrot.slane %v400, %v414
      %v419 = vcombine.high %v404, %v404
      %v421 = vmul.f32 %v411, %v404
      %v422 = vmul.f32 %v415, %v419
      %v424 = vlaneseq
      %v425 = vshrl.u32 %v424, 7
      %v426 = vsub.s32 0, %v425
      %v427 = vrot.slane %v402, %v426
      %v428 = vlaneseq
      %v429 = vshrl.u32 %v428, 7
      %v430 = vsub.s32 1, %v429
      %v431 = vrot.slane %v402, %v430
      %v435 = vcombine.high %v406, %v406
      %v437 = vmul.f32 %v427, %v406
      %v438 = vmul.f32 %v431, %v435
      %v439 = vsub.f32 %v421, %v437
      %v440 = vsub.f32 %v422, %v438
      %v441 = vadd.f32 %v389, %v439
      %v442 = vadd.f32 %v390, %v440
      %v443 = vmul.f32 %v411, %v406
      %v444 = vmul.f32 %v415, %v435
      %v445 = vmul.f32 %v427, %v404
      %v446 = vmul.f32 %v431, %v419
      %v447 = vadd.f32 %v443, %v445
      %v448 = vadd.f32 %v444, %v446
      %v449 = vadd.f32 %v397, %v447
      %v450 = vadd.f32 %v398, %v448
      %v453 = vrot.slane %v449, 4
      %v454 = vrot.slane %v450, 4
      %vm457 = vcmask 1043456
      %v458 = vsel %vm457, %v441, %v453
      %v459 = vsel %vm457, %v442, %v454
      %460 = vst [vmem:[%s248] sm:$0xff] %v458
      %461 = vst [vmem:[%s248 + $0x8] sm:$0xff] %v459
      %s462 = smul.u32 2, %s18
      %p463 = scmp.lt.s32.totalorder %s19, 1
      %s464 = scalar_select %p463, %s19, 1
      %p465 = scmp.lt.s32.totalorder %s462, 1
      %s466 = scalar_select %p465, %s462, 1
      %s467 = smul.addr %s464, 2
      %s468 = sadd.s32 %s466, %s467
      %s469 = smul.addr %s468, 8
      %s470 = scalar_lea.vmem %s3, %s469
      // Predicated region
      $region33: #{spectral_conv3d.1} parent=31 // pred_check
        %p471 = pneg %p126
      $region34: #{spectral_conv3d.1} parent=31 // pred_check_branch
        %473 = sbr.rel (%p471) target = $region36
      $region35: #{spectral_conv3d.1} parent=31 // pred_region
        %s474 = smul.u32 2, %s18
      $region36: #{spectral_conv3d.1} parent=31 // pred_fallthru
        _
    $region32: #{spectral_conv3d.1} parent=5 // pred_fallthru
      _
    %p475 = scmp.le.s32.totalorder 2, %s9
    // Predicated region
    $region37: #{spectral_conv3d.1} parent=5 // pred_check
      %p476 = pneg %p475
    $region38: #{spectral_conv3d.1} parent=5 // pred_check_branch
      %478 = sbr.rel (%p476) target = $region40
    $region39: #{spectral_conv3d.1} parent=5 // pred_region
      %s479 = ssub.s32 %s9, 2
      // Predicated region
      $region41: #{spectral_conv3d.1} parent=39 // pred_check
        %p480 = pneg %p132
      $region42: #{spectral_conv3d.1} parent=39 // pred_check_branch
        %482 = sbr.rel (%p480) target = $region44
      $region43: #{spectral_conv3d.1} parent=39 // pred_region
        %s483 = smul.u32 2, %s20
        %p484 = scmp.lt.s32.totalorder %s21, 1
        %s485 = scalar_select %p484, %s21, 1
        %p486 = scmp.lt.s32.totalorder %s483, 1
        %s487 = scalar_select %p486, %s483, 1
        %s488 = smul.addr %s485, 2
        %s489 = sadd.s32 %s487, %s488
        %s490 = smul.addr %s489, 8
        %s491 = scalar_lea.vmem %s3, %s490
      $region44: #{spectral_conv3d.1} parent=39 // pred_fallthru
        _
    $region40: #{spectral_conv3d.1} parent=5 // pred_fallthru
      _
  $region6: #{spectral_conv3d.1} parent=0 // loop_footer
    %s13 = sadd.s32 1, %s9
  $region7: #{spectral_conv3d.1} parent=0 // loop_footer_branch
    %8 = sbr.rel target = $region3
  $region8: #{spectral_conv3d.1} parent=0 // loop_exit
    _

// kernel: reverse.1
$region0: #{reverse.1}
  #allocation0 [shape = 's32[1]{0}', space=sflag, size = 0x4, scoped, tag = 'scoped memory for reverse.1']
  %s0 = inlined_call_operand.vmem [shape: f32[2,4,16,16,7], index: 0, kind: input, shape index: {}]
  %s1 = inlined_call_operand.vmem [shape: f32[2,4,16,16,7], index: 1, kind: output, shape index: {}]
  %s2 = scalar_lea.vmem %s0, 96
  %v3 = vld [vmem:[%s2] sm:$0xff]
  %4 = vst [vmem:[%s1] sm:$0xff] %v3
  %s5 = scalar_lea.vmem %s0, 544
  %v6 = vld [vmem:[%s5] sm:$0xff]
  %s7 = scalar_lea.vmem %s1, 448
  %8 = vst [vmem:[%s7] sm:$0xff] %v6
  %s9 = scalar_lea.vmem %s0, 208
  %v10 = vld [vmem:[%s9] sm:$0xff]
  %s11 = scalar_lea.vmem %s1, 112
  %12 = vst [vmem:[%s11] sm:$0xff] %v10
  %s13 = scalar_lea.vmem %s0, 656
  %v14 = vld [vmem:[%s13] sm:$0xff]
  %s15 = scalar_lea.vmem %s1, 560
  %16 = vst [vmem:[%s15] sm:$0xff] %v14
  %s17 = scalar_lea.vmem %s0, 320
  %v18 = vld [vmem:[%s17] sm:$0xff]
  %s19 = scalar_lea.vmem %s1, 224
  %20 = vst [vmem:[%s19] sm:$0xff] %v18
  %s21 = scalar_lea.vmem %s0, 768
  %v22 = vld [vmem:[%s21] sm:$0xff]
  %s23 = scalar_lea.vmem %s1, 672
  %24 = vst [vmem:[%s23] sm:$0xff] %v22
  %s25 = scalar_lea.vmem %s0, 432
  %v26 = vld [vmem:[%s25] sm:$0xff]
  %s27 = scalar_lea.vmem %s1, 336
  %28 = vst [vmem:[%s27] sm:$0xff] %v26
  %s29 = scalar_lea.vmem %s0, 880
  %v30 = vld [vmem:[%s29] sm:$0xff]
  %s31 = scalar_lea.vmem %s1, 784
  %32 = vst [vmem:[%s31] sm:$0xff] %v30
  %s33 = scalar_lea.vmem %s0, 80
  %v34 = vld [vmem:[%s33] sm:$0xff]
  %s35 = scalar_lea.vmem %s1, 16
  %36 = vst [vmem:[%s35] sm:$0xff] %v34
  %s37 = scalar_lea.vmem %s0, 528
  %v38 = vld [vmem:[%s37] sm:$0xff]
  %s39 = scalar_lea.vmem %s1, 464
  %40 = vst [vmem:[%s39] sm:$0xff] %v38
  %s41 = scalar_lea.vmem %s0, 192
  %v42 = vld [vmem:[%s41] sm:$0xff]
  %s43 = scalar_lea.vmem %s1, 128
  %44 = vst [vmem:[%s43] sm:$0xff] %v42
  %s45 = scalar_lea.vmem %s0, 640
  %v46 = vld [vmem:[%s45] sm:$0xff]
  %s47 = scalar_lea.vmem %s1, 576
  %48 = vst [vmem:[%s47] sm:$0xff] %v46
  %s49 = scalar_lea.vmem %s0, 304
  %v50 = vld [vmem:[%s49] sm:$0xff]
  %s51 = scalar_lea.vmem %s1, 240
  %52 = vst [vmem:[%s51] sm:$0xff] %v50
  %s53 = scalar_lea.vmem %s0, 752
  %v54 = vld [vmem:[%s53] sm:$0xff]
  %s55 = scalar_lea.vmem %s1, 688
  %56 = vst [vmem:[%s55] sm:$0xff] %v54
  %s57 = scalar_lea.vmem %s0, 416
  %v58 = vld [vmem:[%s57] sm:$0xff]
  %s59 = scalar_lea.vmem %s1, 352
  %60 = vst [vmem:[%s59] sm:$0xff] %v58
  %s61 = scalar_lea.vmem %s0, 864
  %v62 = vld [vmem:[%s61] sm:$0xff]
  %s63 = scalar_lea.vmem %s1, 800
  %64 = vst [vmem:[%s63] sm:$0xff] %v62
  %s65 = scalar_lea.vmem %s0, 64
  %v66 = vld [vmem:[%s65] sm:$0xff]
  %s67 = scalar_lea.vmem %s1, 32
  %68 = vst [vmem:[%s67] sm:$0xff] %v66
  %s69 = scalar_lea.vmem %s0, 512
  %v70 = vld [vmem:[%s69] sm:$0xff]
  %s71 = scalar_lea.vmem %s1, 480
  %72 = vst [vmem:[%s71] sm:$0xff] %v70
  %s73 = scalar_lea.vmem %s0, 176
  %v74 = vld [vmem:[%s73] sm:$0xff]
  %s75 = scalar_lea.vmem %s1, 144
  %76 = vst [vmem:[%s75] sm:$0xff] %v74
  %s77 = scalar_lea.vmem %s0, 624
  %v78 = vld [vmem:[%s77] sm:$0xff]
  %s79 = scalar_lea.vmem %s1, 592
  %80 = vst [vmem:[%s79] sm:$0xff] %v78
  %s81 = scalar_lea.vmem %s0, 288
  %v82 = vld [vmem:[%s81] sm:$0xff]
  %s83 = scalar_lea.vmem %s1, 256
  %84 = vst [vmem:[%s83] sm:$0xff] %v82
  %s85 = scalar_lea.vmem %s0, 736
  %v86 = vld [vmem:[%s85] sm:$0xff]
  %s87 = scalar_lea.vmem %s1, 704
  %88 = vst [vmem:[%s87] sm:$0xff] %v86
  %s89 = scalar_lea.vmem %s0, 400
  %v90 = vld [vmem:[%s89] sm:$0xff]
  %s91 = scalar_lea.vmem %s1, 368
  %92 = vst [vmem:[%s91] sm:$0xff] %v90
  %s93 = scalar_lea.vmem %s0, 848
  %v94 = vld [vmem:[%s93] sm:$0xff]
  %s95 = scalar_lea.vmem %s1, 816
  %96 = vst [vmem:[%s95] sm:$0xff] %v94
  %s97 = scalar_lea.vmem %s0, 48
  %v98 = vld [vmem:[%s97] sm:$0xff]
  %s99 = scalar_lea.vmem %s1, 48
  %100 = vst [vmem:[%s99] sm:$0xff] %v98
  %s101 = scalar_lea.vmem %s0, 496
  %v102 = vld [vmem:[%s101] sm:$0xff]
  %s103 = scalar_lea.vmem %s1, 496
  %104 = vst [vmem:[%s103] sm:$0xff] %v102
  %s105 = scalar_lea.vmem %s0, 160
  %v106 = vld [vmem:[%s105] sm:$0xff]
  %s107 = scalar_lea.vmem %s1, 160
  %108 = vst [vmem:[%s107] sm:$0xff] %v106
  %s109 = scalar_lea.vmem %s0, 608
  %v110 = vld [vmem:[%s109] sm:$0xff]
  %s111 = scalar_lea.vmem %s1, 608
  %112 = vst [vmem:[%s111] sm:$0xff] %v110
  %s113 = scalar_lea.vmem %s0, 272
  %v114 = vld [vmem:[%s113] sm:$0xff]
  %s115 = scalar_lea.vmem %s1, 272
  %116 = vst [vmem:[%s115] sm:$0xff] %v114
  %s117 = scalar_lea.vmem %s0, 720
  %v118 = vld [vmem:[%s117] sm:$0xff]
  %s119 = scalar_lea.vmem %s1, 720
  %120 = vst [vmem:[%s119] sm:$0xff] %v118
  %s121 = scalar_lea.vmem %s0, 384
  %v122 = vld [vmem:[%s121] sm:$0xff]
  %s123 = scalar_lea.vmem %s1, 384
  %124 = vst [vmem:[%s123] sm:$0xff] %v122
  %s125 = scalar_lea.vmem %s0, 832
  %v126 = vld [vmem:[%s125] sm:$0xff]
  %s127 = scalar_lea.vmem %s1, 832
  %128 = vst [vmem:[%s127] sm:$0xff] %v126
  %s129 = scalar_lea.vmem %s0, 32
  %v130 = vld [vmem:[%s129] sm:$0xff]
  %s131 = scalar_lea.vmem %s1, 64
  %132 = vst [vmem:[%s131] sm:$0xff] %v130
  %s133 = scalar_lea.vmem %s0, 480
  %v134 = vld [vmem:[%s133] sm:$0xff]
  %s135 = scalar_lea.vmem %s1, 512
  %136 = vst [vmem:[%s135] sm:$0xff] %v134
  %s137 = scalar_lea.vmem %s0, 144
  %v138 = vld [vmem:[%s137] sm:$0xff]
  %s139 = scalar_lea.vmem %s1, 176
  %140 = vst [vmem:[%s139] sm:$0xff] %v138
  %s141 = scalar_lea.vmem %s0, 592
  %v142 = vld [vmem:[%s141] sm:$0xff]
  %s143 = scalar_lea.vmem %s1, 624
  %144 = vst [vmem:[%s143] sm:$0xff] %v142
  %s145 = scalar_lea.vmem %s0, 256
  %v146 = vld [vmem:[%s145] sm:$0xff]
  %s147 = scalar_lea.vmem %s1, 288
  %148 = vst [vmem:[%s147] sm:$0xff] %v146
  %s149 = scalar_lea.vmem %s0, 704
  %v150 = vld [vmem:[%s149] sm:$0xff]
  %s151 = scalar_lea.vmem %s1, 736
  %152 = vst [vmem:[%s151] sm:$0xff] %v150
  %s153 = scalar_lea.vmem %s0, 368
  %v154 = vld [vmem:[%s153] sm:$0xff]
  %s155 = scalar_lea.vmem %s1, 400
  %156 = vst [vmem:[%s155] sm:$0xff] %v154
  %s157 = scalar_lea.vmem %s0, 816
  %v158 = vld [vmem:[%s157] sm:$0xff]
  %s159 = scalar_lea.vmem %s1, 848
  %160 = vst [vmem:[%s159] sm:$0xff] %v158
  %s161 = scalar_lea.vmem %s0, 16
  %v162 = vld [vmem:[%s161] sm:$0xff]
  %s163 = scalar_lea.vmem %s1, 80
  %164 = vst [vmem:[%s163] sm:$0xff] %v162
  %s165 = scalar_lea.vmem %s0, 464
  %v166 = vld [vmem:[%s165] sm:$0xff]
  %s167 = scalar_lea.vmem %s1, 528
  %168 = vst [vmem:[%s167] sm:$0xff] %v166
  %s169 = scalar_lea.vmem %s0, 128
  %v170 = vld [vmem:[%s169] sm:$0xff]
  %s171 = scalar_lea.vmem %s1, 192
  %172 = vst [vmem:[%s171] sm:$0xff] %v170
  %s173 = scalar_lea.vmem %s0, 576
  %v174 = vld [vmem:[%s173] sm:$0xff]
  %s175 = scalar_lea.vmem %s1, 640
  %176 = vst [vmem:[%s175] sm:$0xff] %v174
  %s177 = scalar_lea.vmem %s0, 240
  %v178 = vld [vmem:[%s177] sm:$0xff]
  %s179 = scalar_lea.vmem %s1, 304
  %180 = vst [vmem:[%s179] sm:$0xff] %v178
  %s181 = scalar_lea.vmem %s0, 688
  %v182 = vld [vmem:[%s181] sm:$0xff]
  %s183 = scalar_lea.vmem %s1, 752
  %184 = vst [vmem:[%s183] sm:$0xff] %v182
  %s185 = scalar_lea.vmem %s0, 352
  %v186 = vld [vmem:[%s185] sm:$0xff]
  %s187 = scalar_lea.vmem %s1, 416
  %188 = vst [vmem:[%s187] sm:$0xff] %v186
  %s189 = scalar_lea.vmem %s0, 800
  %v190 = vld [vmem:[%s189] sm:$0xff]
  %s191 = scalar_lea.vmem %s1, 864
  %192 = vst [vmem:[%s191] sm:$0xff] %v190
  %v193 = vld [vmem:[%s0] sm:$0xff]
  %s194 = scalar_lea.vmem %s1, 96
  %195 = vst [vmem:[%s194] sm:$0xff] %v193
  %s196 = scalar_lea.vmem %s0, 448
  %v197 = vld [vmem:[%s196] sm:$0xff]
  %s198 = scalar_lea.vmem %s1, 544
  %199 = vst [vmem:[%s198] sm:$0xff] %v197
  %s200 = scalar_lea.vmem %s0, 112
  %v201 = vld [vmem:[%s200] sm:$0xff]
  %s202 = scalar_lea.vmem %s1, 208
  %203 = vst [vmem:[%s202] sm:$0xff] %v201
  %s204 = scalar_lea.vmem %s0, 560
  %v205 = vld [vmem:[%s204] sm:$0xff]
  %s206 = scalar_lea.vmem %s1, 656
  %207 = vst [vmem:[%s206] sm:$0xff] %v205
  %s208 = scalar_lea.vmem %s0, 224
  %v209 = vld [vmem:[%s208] sm:$0xff]
  %s210 = scalar_lea.vmem %s1, 320
  %211 = vst [vmem:[%s210] sm:$0xff] %v209
  %s212 = scalar_lea.vmem %s0, 672
  %v213 = vld [vmem:[%s212] sm:$0xff]
  %s214 = scalar_lea.vmem %s1, 768
  %215 = vst [vmem:[%s214] sm:$0xff] %v213
  %s216 = scalar_lea.vmem %s0, 336
  %v217 = vld [vmem:[%s216] sm:$0xff]
  %s218 = scalar_lea.vmem %s1, 432
  %219 = vst [vmem:[%s218] sm:$0xff] %v217
  %s220 = scalar_lea.vmem %s0, 784
  %v221 = vld [vmem:[%s220] sm:$0xff]
  %s222 = scalar_lea.vmem %s1, 880
  %223 = vst [vmem:[%s222] sm:$0xff] %v221
  %s224 = scalar_lea.vmem %s0, 104
  %v225 = vld [vmem:[%s224] sm:$0xff]
  %s226 = scalar_lea.vmem %s1, 8
  %227 = vst [vmem:[%s226] sm:$0xff] %v225
  %s228 = scalar_lea.vmem %s0, 552
  %v229 = vld [vmem:[%s228] sm:$0xff]
  %s230 = scalar_lea.vmem %s1, 456
  %231 = vst [vmem:[%s230] sm:$0xff] %v229
  %s232 = scalar_lea.vmem %s0, 216
  %v233 = vld [vmem:[%s232] sm:$0xff]
  %s234 = scalar_lea.vmem %s1, 120
  %235 = vst [vmem:[%s234] sm:$0xff] %v233
  %s236 = scalar_lea.vmem %s0, 664
  %v237 = vld [vmem:[%s236] sm:$0xff]
  %s238 = scalar_lea.vmem %s1, 568
  %239 = vst [vmem:[%s238] sm:$0xff] %v237
  %s240 = scalar_lea.vmem %s0, 328
  %v241 = vld [vmem:[%s240] sm:$0xff]
  %s242 = scalar_lea.vmem %s1, 232
  %243 = vst [vmem:[%s242] sm:$0xff] %v241
  %s244 = scalar_lea.vmem %s0, 776
  %v245 = vld [vmem:[%s244] sm:$0xff]
  %s246 = scalar_lea.vmem %s1, 680
  %247 = vst [vmem:[%s246] sm:$0xff] %v245
  %s248 = scalar_lea.vmem %s0, 440
  %v249 = vld [vmem:[%s248] sm:$0xff]
  %s250 = scalar_lea.vmem %s1, 344
  %251 = vst [vmem:[%s250] sm:$0xff] %v249
  %s252 = scalar_lea.vmem %s0, 888
  %v253 = vld [vmem:[%s252] sm:$0xff]
  %s254 = scalar_lea.vmem %s1, 792
  %255 = vst [vmem:[%s254] sm:$0xff] %v253
  %s256 = scalar_lea.vmem %s0, 88
  %v257 = vld [vmem:[%s256] sm:$0xff]
  %s258 = scalar_lea.vmem %s1, 24
  %259 = vst [vmem:[%s258] sm:$0xff] %v257
  %s260 = scalar_lea.vmem %s0, 536
  %v261 = vld [vmem:[%s260] sm:$0xff]
  %s262 = scalar_lea.vmem %s1, 472
  %263 = vst [vmem:[%s262] sm:$0xff] %v261
  %s264 = scalar_lea.vmem %s0, 200
  %v265 = vld [vmem:[%s264] sm:$0xff]
  %s266 = scalar_lea.vmem %s1, 136
  %267 = vst [vmem:[%s266] sm:$0xff] %v265
  %s268 = scalar_lea.vmem %s0, 648
  %v269 = vld [vmem:[%s268] sm:$0xff]
  %s270 = scalar_lea.vmem %s1, 584
  %271 = vst [vmem:[%s270] sm:$0xff] %v269
  %s272 = scalar_lea.vmem %s0, 312
  %v273 = vld [vmem:[%s272] sm:$0xff]
  %s274 = scalar_lea.vmem %s1, 248
  %275 = vst [vmem:[%s274] sm:$0xff] %v273
  %s276 = scalar_lea.vmem %s0, 760
  %v277 = vld [vmem:[%s276] sm:$0xff]
  %s278 = scalar_lea.vmem %s1, 696
  %279 = vst [vmem:[%s278] sm:$0xff] %v277
  %s280 = scalar_lea.vmem %s0, 424
  %v281 = vld [vmem:[%s280] sm:$0xff]
  %s282 = scalar_lea.vmem %s1, 360
  %283 = vst [vmem:[%s282] sm:$0xff] %v281
  %s284 = scalar_lea.vmem %s0, 872
  %v285 = vld [vmem:[%s284] sm:$0xff]
  %s286 = scalar_lea.vmem %s1, 808
  %287 = vst [vmem:[%s286] sm:$0xff] %v285
  %s288 = scalar_lea.vmem %s0, 72
  %v289 = vld [vmem:[%s288] sm:$0xff]
  %s290 = scalar_lea.vmem %s1, 40
  %291 = vst [vmem:[%s290] sm:$0xff] %v289
  %s292 = scalar_lea.vmem %s0, 520
  %v293 = vld [vmem:[%s292] sm:$0xff]
  %s294 = scalar_lea.vmem %s1, 488
  %295 = vst [vmem:[%s294] sm:$0xff] %v293
  %s296 = scalar_lea.vmem %s0, 184
  %v297 = vld [vmem:[%s296] sm:$0xff]
  %s298 = scalar_lea.vmem %s1, 152
  %299 = vst [vmem:[%s298] sm:$0xff] %v297
  %s300 = scalar_lea.vmem %s0, 632
  %v301 = vld [vmem:[%s300] sm:$0xff]
  %s302 = scalar_lea.vmem %s1, 600
  %303 = vst [vmem:[%s302] sm:$0xff] %v301
  %s304 = scalar_lea.vmem %s0, 296
  %v305 = vld [vmem:[%s304] sm:$0xff]
  %s306 = scalar_lea.vmem %s1, 264
  %307 = vst [vmem:[%s306] sm:$0xff] %v305
  %s308 = scalar_lea.vmem %s0, 744
  %v309 = vld [vmem:[%s308] sm:$0xff]
  %s310 = scalar_lea.vmem %s1, 712
  %311 = vst [vmem:[%s310] sm:$0xff] %v309
  %s312 = scalar_lea.vmem %s0, 408
  %v313 = vld [vmem:[%s312] sm:$0xff]
  %s314 = scalar_lea.vmem %s1, 376
  %315 = vst [vmem:[%s314] sm:$0xff] %v313
  %s316 = scalar_lea.vmem %s0, 856
  %v317 = vld [vmem:[%s316] sm:$0xff]
  %s318 = scalar_lea.vmem %s1, 824
  %319 = vst [vmem:[%s318] sm:$0xff] %v317
  %s320 = scalar_lea.vmem %s0, 56
  %v321 = vld [vmem:[%s320] sm:$0xff]
  %s322 = scalar_lea.vmem %s1, 56
  %323 = vst [vmem:[%s322] sm:$0xff] %v321
  %s324 = scalar_lea.vmem %s0, 504
  %v325 = vld [vmem:[%s324] sm:$0xff]
  %s326 = scalar_lea.vmem %s1, 504
  %327 = vst [vmem:[%s326] sm:$0xff] %v325
  %s328 = scalar_lea.vmem %s0, 168
  %v329 = vld [vmem:[%s328] sm:$0xff]
  %s330 = scalar_lea.vmem %s1, 168
  %331 = vst [vmem:[%s330] sm:$0xff] %v329
  %s332 = scalar_lea.vmem %s0, 616
  %v333 = vld [vmem:[%s332] sm:$0xff]
  %s334 = scalar_lea.vmem %s1, 616
  %335 = vst [vmem:[%s334] sm:$0xff] %v333
  %s336 = scalar_lea.vmem %s0, 280
  %v337 = vld [vmem:[%s336] sm:$0xff]
  %s338 = scalar_lea.vmem %s1, 280
  %339 = vst [vmem:[%s338] sm:$0xff] %v337
  %s340 = scalar_lea.vmem %s0, 728
  %v341 = vld [vmem:[%s340] sm:$0xff]
  %s342 = scalar_lea.vmem %s1, 728
  %343 = vst [vmem:[%s342] sm:$0xff] %v341
  %s344 = scalar_lea.vmem %s0, 392
  %v345 = vld [vmem:[%s344] sm:$0xff]
  %s346 = scalar_lea.vmem %s1, 392
  %347 = vst [vmem:[%s346] sm:$0xff] %v345
  %s348 = scalar_lea.vmem %s0, 840
  %v349 = vld [vmem:[%s348] sm:$0xff]
  %s350 = scalar_lea.vmem %s1, 840
  %351 = vst [vmem:[%s350] sm:$0xff] %v349
  %s352 = scalar_lea.vmem %s0, 40
  %v353 = vld [vmem:[%s352] sm:$0xff]
  %s354 = scalar_lea.vmem %s1, 72
  %355 = vst [vmem:[%s354] sm:$0xff] %v353
  %s356 = scalar_lea.vmem %s0, 488
  %v357 = vld [vmem:[%s356] sm:$0xff]
  %s358 = scalar_lea.vmem %s1, 520
  %359 = vst [vmem:[%s358] sm:$0xff] %v357
  %s360 = scalar_lea.vmem %s0, 152
  %v361 = vld [vmem:[%s360] sm:$0xff]
  %s362 = scalar_lea.vmem %s1, 184
  %363 = vst [vmem:[%s362] sm:$0xff] %v361
  %s364 = scalar_lea.vmem %s0, 600
  %v365 = vld [vmem:[%s364] sm:$0xff]
  %s366 = scalar_lea.vmem %s1, 632
  %367 = vst [vmem:[%s366] sm:$0xff] %v365
  %s368 = scalar_lea.vmem %s0, 264
  %v369 = vld [vmem:[%s368] sm:$0xff]
  %s370 = scalar_lea.vmem %s1, 296
  %371 = vst [vmem:[%s370] sm:$0xff] %v369
  %s372 = scalar_lea.vmem %s0, 712
  %v373 = vld [vmem:[%s372] sm:$0xff]
  %s374 = scalar_lea.vmem %s1, 744
  %375 = vst [vmem:[%s374] sm:$0xff] %v373
  %s376 = scalar_lea.vmem %s0, 376
  %v377 = vld [vmem:[%s376] sm:$0xff]
  %s378 = scalar_lea.vmem %s1, 408
  %379 = vst [vmem:[%s378] sm:$0xff] %v377
  %s380 = scalar_lea.vmem %s0, 824
  %v381 = vld [vmem:[%s380] sm:$0xff]
  %s382 = scalar_lea.vmem %s1, 856
  %383 = vst [vmem:[%s382] sm:$0xff] %v381
  %s384 = scalar_lea.vmem %s0, 24
  %v385 = vld [vmem:[%s384] sm:$0xff]
  %s386 = scalar_lea.vmem %s1, 88
  %387 = vst [vmem:[%s386] sm:$0xff] %v385
  %s388 = scalar_lea.vmem %s0, 472
  %v389 = vld [vmem:[%s388] sm:$0xff]
  %s390 = scalar_lea.vmem %s1, 536
  %391 = vst [vmem:[%s390] sm:$0xff] %v389
  %s392 = scalar_lea.vmem %s0, 136
  %v393 = vld [vmem:[%s392] sm:$0xff]
  %s394 = scalar_lea.vmem %s1, 200
  %395 = vst [vmem:[%s394] sm:$0xff] %v393
  %s396 = scalar_lea.vmem %s0, 584
  %v397 = vld [vmem:[%s396] sm:$0xff]
  %s398 = scalar_lea.vmem %s1, 648
  %399 = vst [vmem:[%s398] sm:$0xff] %v397
  %s400 = scalar_lea.vmem %s0, 248
  %v401 = vld [vmem:[%s400] sm:$0xff]
  %s402 = scalar_lea.vmem %s1, 312
  %403 = vst [vmem:[%s402] sm:$0xff] %v401
  %s404 = scalar_lea.vmem %s0, 696
  %v405 = vld [vmem:[%s404] sm:$0xff]
  %s406 = scalar_lea.vmem %s1, 760
  %407 = vst [vmem:[%s406] sm:$0xff] %v405
  %s408 = scalar_lea.vmem %s0, 360
  %v409 = vld [vmem:[%s408] sm:$0xff]
  %s410 = scalar_lea.vmem %s1, 424
  %411 = vst [vmem:[%s410] sm:$0xff] %v409
  %s412 = scalar_lea.vmem %s0, 808
  %v413 = vld [vmem:[%s412] sm:$0xff]
  %s414 = scalar_lea.vmem %s1, 872
  %415 = vst [vmem:[%s414] sm:$0xff] %v413
  %s416 = scalar_lea.vmem %s0, 8
  %v417 = vld [vmem:[%s416] sm:$0xff]
  %s418 = scalar_lea.vmem %s1, 104
  %419 = vst [vmem:[%s418] sm:$0xff] %v417
  %s420 = scalar_lea.vmem %s0, 456
  %v421 = vld [vmem:[%s420] sm:$0xff]
  %s422 = scalar_lea.vmem %s1, 552
  %423 = vst [vmem:[%s422] sm:$0xff] %v421
  %s424 = scalar_lea.vmem %s0, 120
  %v425 = vld [vmem:[%s424] sm:$0xff]
  %s426 = scalar_lea.vmem %s1, 216
  %427 = vst [vmem:[%s426] sm:$0xff] %v425
  %s428 = scalar_lea.vmem %s0, 568
  %v429 = vld [vmem:[%s428] sm:$0xff]
  %s430 = scalar_lea.vmem %s1, 664
  %431 = vst [vmem:[%s430] sm:$0xff] %v429
  %s432 = scalar_lea.vmem %s0, 232
  %v433 = vld [vmem:[%s432] sm:$0xff]
  %s434 = scalar_lea.vmem %s1, 328
  %435 = vst [vmem:[%s434] sm:$0xff] %v433
  %s436 = scalar_lea.vmem %s0, 680
  %v437 = vld [vmem:[%s436] sm:$0xff]
  %s438 = scalar_lea.vmem %s1, 776
  %439 = vst [vmem:[%s438] sm:$0xff] %v437
  %s440 = scalar_lea.vmem %s0, 344
  %v441 = vld [vmem:[%s440] sm:$0xff]
  %s442 = scalar_lea.vmem %s1, 440
  %443 = vst [vmem:[%s442] sm:$0xff] %v441
  %s444 = scalar_lea.vmem %s0, 792
  %v445 = vld [vmem:[%s444] sm:$0xff]
  %s446 = scalar_lea.vmem %s1, 888
  %447 = vst [vmem:[%s446] sm:$0xff] %v445

</llo_original>
